<compile_context>
chip_gen: v7x
topology: tpu7x:2x2x1
jax: 0.10.0
libtpu: 0.0.40
codegen_flags: <defaults>
</compile_context>

<pallas_src>
import functools

import jax
import jax.numpy as jnp
from jax.experimental import pallas as pl
from jax.experimental.pallas import tpu as pltpu

_LANE = 128                     # lane width / feature padding target
_SUB = 8                        # sublane alignment
_ROW_TILE = 256                 # node-dim tile target (rows & K of A_hat)
_VMEM_LIMIT = 32 * 1024 * 1024  # matched to the small tiles used here


def _round_up(x, m):
    return (x + m - 1) // m * m


def _node_tiling(n):
    """Padded node count and row/K tile size for the N x N aggregation."""
    if n <= _ROW_TILE:
        n_p = _round_up(n, _SUB)
        return n_p, n_p          # single tile == full (padded) dim
    return _round_up(n, _ROW_TILE), _ROW_TILE


# ----------------------------------------------------------------------------
# Kernel 1: tiled  out = [relu](A @ X + b)   (GCN aggregation, bf16 -> f32 acc)
# ----------------------------------------------------------------------------
def _agg_kernel(a_ref, x_ref, b_ref, o_ref, acc_ref, *, apply_relu):
    @pl.when(pl.program_id(2) == 0)
    def _():
        acc_ref[...] = jnp.zeros_like(acc_ref)

    acc_ref[...] += jnp.dot(a_ref[...], x_ref[...],
                            preferred_element_type=jnp.float32)

    @pl.when(pl.program_id(2) == pl.num_programs(2) - 1)
    def _():
        out = acc_ref[...] + b_ref[...]
        if apply_relu:
            out = jnp.maximum(out, 0.0)
        o_ref[...] = out.astype(o_ref.dtype)


def gcn_aggregate(a_hat, x, bias, *, relu, tile):
    """a_hat: (Np, Np) bf16, x: (Np, F) bf16 (F % 128 == 0), bias: (F,) f32."""
    mp, kp = a_hat.shape
    f = x.shape[1]
    tm = tk = tile
    tn = _LANE if f % _LANE == 0 else f
    grid = (mp // tm, f // tn, kp // tk)
    kern = functools.partial(_agg_kernel, apply_relu=relu)
    return pl.pallas_call(
        kern,
        out_shape=jax.ShapeDtypeStruct((mp, f), jnp.bfloat16),
        grid=grid,
        in_specs=[
            pl.BlockSpec((tm, tk), lambda i, j, k: (i, k)),
            pl.BlockSpec((tk, tn), lambda i, j, k: (k, j)),
            pl.BlockSpec((1, tn), lambda i, j, k: (0, j)),
        ],
        out_specs=pl.BlockSpec((tm, tn), lambda i, j, k: (i, j)),
        scratch_shapes=[pltpu.VMEM((tm, tn), jnp.float32)],
        compiler_params=pltpu.CompilerParams(
            dimension_semantics=("parallel", "parallel", "arbitrary"),
            vmem_limit_bytes=_VMEM_LIMIT),
    )(a_hat, x, bias.reshape(1, -1).astype(jnp.float32))


# ----------------------------------------------------------------------------
# Kernel 2: fused GCN layer  out = [relu](A @ (H @ W) + b)
#   (feature transform recomputed per K tile; no HBM intermediate)
# ----------------------------------------------------------------------------
def _fused_gcn_kernel(a_ref, h_ref, w_ref, b_ref, o_ref, acc_ref, *, apply_relu):
    @pl.when(pl.program_id(2) == 0)
    def _():
        acc_ref[...] = jnp.zeros_like(acc_ref)

    hw = jnp.dot(h_ref[...], w_ref[...], preferred_element_type=jnp.float32)
    acc_ref[...] += jnp.dot(a_ref[...], hw.astype(jnp.bfloat16),
                            preferred_element_type=jnp.float32)

    @pl.when(pl.program_id(2) == pl.num_programs(2) - 1)
    def _():
        out = acc_ref[...] + b_ref[...]
        if apply_relu:
            out = jnp.maximum(out, 0.0)
        o_ref[...] = out.astype(o_ref.dtype)


def gcn_layer_fused(a_hat, h, w, bias, *, relu, tile):
    """a_hat: (Np, Np) bf16, h: (Np, Fin) bf16, w: (Fin, Fout) bf16."""
    mp, kp = a_hat.shape
    fin = h.shape[1]
    fout = w.shape[1]
    tm = tk = tile
    tn = _LANE if fout % _LANE == 0 else fout
    grid = (mp // tm, fout // tn, kp // tk)
    kern = functools.partial(_fused_gcn_kernel, apply_relu=relu)
    return pl.pallas_call(
        kern,
        out_shape=jax.ShapeDtypeStruct((mp, fout), jnp.bfloat16),
        grid=grid,
        in_specs=[
            pl.BlockSpec((tm, tk), lambda i, j, k: (i, k)),
            pl.BlockSpec((tk, fin), lambda i, j, k: (k, 0)),
            pl.BlockSpec((fin, tn), lambda i, j, k: (0, j)),
            pl.BlockSpec((1, tn), lambda i, j, k: (0, j)),
        ],
        out_specs=pl.BlockSpec((tm, tn), lambda i, j, k: (i, j)),
        scratch_shapes=[pltpu.VMEM((tm, tn), jnp.float32)],
        compiler_params=pltpu.CompilerParams(
            dimension_semantics=("parallel", "parallel", "arbitrary"),
            vmem_limit_bytes=_VMEM_LIMIT),
    )(a_hat, h, w, bias.reshape(1, -1).astype(jnp.float32))


# ----------------------------------------------------------------------------
# Kernel 3: pooled MLP head in a single call:
#   out = (relu((pool @ h) @ w3 + b3)) @ w4 + b4
# (G is tiny; one single-block kernel replaces three separate launches)
# ----------------------------------------------------------------------------
def _tail_kernel(pool_ref, h_ref, w3_ref, b3_ref, w4_ref, b4_ref, o_ref):
    pooled = jnp.dot(pool_ref[...], h_ref[...],
                     preferred_element_type=jnp.float32)
    h3 = jnp.dot(pooled.astype(jnp.bfloat16), w3_ref[...],
                 preferred_element_type=jnp.float32) + b3_ref[...]
    h3 = jnp.maximum(h3, 0.0)
    out = jnp.dot(h3.astype(jnp.bfloat16), w4_ref[...],
                  preferred_element_type=jnp.float32) + b4_ref[...]
    o_ref[...] = out


def pooled_mlp_head(pool, h, w3, b3, w4, b4):
    gp, np_ = pool.shape
    f = h.shape[1]
    f3 = w3.shape[1]
    fo = w4.shape[1]

    def _full_spec(shape):
        return pl.BlockSpec(shape, lambda i: (0,) * len(shape))

    return pl.pallas_call(
        _tail_kernel,
        out_shape=jax.ShapeDtypeStruct((gp, fo), jnp.float32),
        grid=(1,),
        in_specs=[
            _full_spec((gp, np_)),
            _full_spec((np_, f)),
            _full_spec((f, f3)),
            _full_spec((1, f3)),
            _full_spec((f3, fo)),
            _full_spec((1, fo)),
        ],
        out_specs=_full_spec((gp, fo)),
        compiler_params=pltpu.CompilerParams(
            dimension_semantics=("arbitrary",),
            vmem_limit_bytes=_VMEM_LIMIT),
    )(pool, h, w3, b3.reshape(1, -1), w4, b4.reshape(1, -1))


# ----------------------------------------------------------------------------
# Parameter init (deterministic, synthetic — mirrors the module's __init__)
# ----------------------------------------------------------------------------
def init_params(key):
    ks = jax.random.split(key, 4)

    def glorot(k, shape):
        fan_in, fan_out = shape
        lim = jnp.sqrt(6.0 / (fan_in + fan_out))
        return jax.random.uniform(k, shape, jnp.float32, -lim, lim)

    return {
        "w1": glorot(ks[0], (1, 64)),     # GCNConv(1, 64)
        "b1": jnp.zeros((64,), jnp.float32),
        "w2": glorot(ks[1], (64, 128)),   # GCNConv(64, 128)
        "b2": jnp.zeros((128,), jnp.float32),
        "w3": glorot(ks[2], (128, 64)),   # Linear(128, 64)
        "b3": jnp.zeros((64,), jnp.float32),
        "w4": glorot(ks[3], (64, 4)),     # Linear(64, 4)
        "b4": jnp.zeros((4,), jnp.float32),
    }


# ----------------------------------------------------------------------------
# Forward pass
# ----------------------------------------------------------------------------
def gnn_forward(params, x, edge_index, batch, num_graphs):
    """x: (N, 1) f32, edge_index: (2, E) int32 (row=src, col=dst),
    batch: (N,) int32 graph ids in [0, num_graphs)."""
    N = x.shape[0]
    n_p, tile = _node_tiling(N)

    # --- glue: dense symmetric-normalized adjacency with self loops ---------
    adj = jnp.zeros((N, N), jnp.float32)
    adj = adj.at[edge_index[1], edge_index[0]].add(1.0)     # src -> dst
    adj = adj + jnp.eye(N, dtype=jnp.float32)               # self loops
    deg = adj.sum(axis=1)
    d_inv_sqrt = jnp.where(deg > 0, 1.0 / jnp.sqrt(deg), 0.0)
    a_hat = adj * d_inv_sqrt[:, None] * d_inv_sqrt[None, :]
    a_hat = jnp.pad(a_hat, ((0, n_p - N), (0, n_p - N))).astype(jnp.bfloat16)

    # --- glue: mean-pooling matrix (num_graphs, N), padded ------------------
    one_hot = (batch[None, :] == jnp.arange(num_graphs)[:, None]).astype(jnp.float32)
    counts = jnp.maximum(one_hot.sum(axis=1, keepdims=True), 1.0)
    pool = one_hot / counts
    g_p = _round_up(num_graphs, _SUB)
    pool = jnp.pad(pool, ((0, g_p - num_graphs), (0, n_p - N))).astype(jnp.bfloat16)

    # --- GCNConv(1, 64) + ReLU ----------------------------------------------
    # in_features == 1: x @ W1 is a broadcast multiply (exact, VPU-trivial).
    xw = x.astype(jnp.float32) * params["w1"][0][None, :]            # (N, 64)
    xw = jnp.pad(xw, ((0, n_p - N), (0, _LANE - xw.shape[1]))).astype(jnp.bfloat16)
    b1 = jnp.pad(params["b1"], (0, _LANE - params["b1"].shape[0]))
    h1 = gcn_aggregate(a_hat, xw, b1, relu=True, tile=tile)    # (Np, 128) bf16

    # --- GCNConv(64, 128) + ReLU, fused transform + aggregation -------------
    w2 = jnp.pad(params["w2"], ((0, _LANE - params["w2"].shape[0]), (0, 0)))
    h2 = gcn_layer_fused(a_hat, h1, w2.astype(jnp.bfloat16), params["b2"],
                         relu=True, tile=tile)                 # (Np, 128) bf16

    # --- global_mean_pool + Linear(128,64)+ReLU + Linear(64,4), one kernel --
    w3 = jnp.pad(params["w3"], ((0, 0), (0, _LANE - params["w3"].shape[1])))
    b3 = jnp.pad(params["b3"], (0, _LANE - params["b3"].shape[0]))
    w4 = jnp.pad(params["w4"], ((0, _LANE - params["w4"].shape[0]),
                                (0, _LANE - params["w4"].shape[1])))
    b4 = jnp.pad(params["b4"], (0, _LANE - params["b4"].shape[0]))
    out = pooled_mlp_head(pool, h2,
                          w3.astype(jnp.bfloat16), b3.astype(jnp.float32),
                          w4.astype(jnp.bfloat16), b4.astype(jnp.float32))
    return out[:num_graphs, :4]


# ----------------------------------------------------------------------------
# Example run
# ----------------------------------------------------------------------------
if __name__ == "__main__":
    key = jax.random.PRNGKey(0)
    k_param, k_x = jax.random.split(key)

    params = init_params(k_param)

    # Two graphs, 8 nodes each (N = 16), each graph is an undirected ring.
    nodes_per_graph = 8
    num_graphs = 2
    N = nodes_per_graph * num_graphs

    def ring_edges(start, n):
        src = jnp.arange(n, dtype=jnp.int32) + start
        dst = (jnp.arange(n, dtype=jnp.int32) + 1) % n + start
        return jnp.stack([jnp.concatenate([src, dst]),
                          jnp.concatenate([dst, src])])

    edge_index = jnp.concatenate(
        [ring_edges(0, nodes_per_graph),
         ring_edges(nodes_per_graph, nodes_per_graph)],
        axis=1,
    )  # (2, 32)

    batch = jnp.concatenate(
        [jnp.zeros((nodes_per_graph,), jnp.int32),
         jnp.ones((nodes_per_graph,), jnp.int32)]
    )  # (16,)

    x = jax.random.normal(k_x, (N, 1), jnp.float32)  # node features

    fwd = jax.jit(gnn_forward, static_argnums=(4,))
    out = fwd(params, x, edge_index, batch, num_graphs)
    out = jax.block_until_ready(out)
    assert out.shape == (num_graphs, 4), out.shape
    print("KERNEL_OK")
</pallas_src>

<mosaic_0001>
module attributes {stable_mosaic.version = 11 : i64} {
  func.func private @main(%arg0: i32) attributes {dimension_semantics = [#tpu.dimension_semantics<core_parallel>], iteration_bounds = array<i64: 2>, tpu.core_type = #tpu.core_type<sc_scalar_subcore>, window_params = []} {
    return
  }
}

module attributes {stable_mosaic.version = 11 : i64} {
  func.func private @main(%arg0: i32) attributes {dimension_semantics = [#tpu.dimension_semantics<core_parallel>], iteration_bounds = array<i64: 2>, tpu.core_type = #tpu.core_type<sc_scalar_subcore>, window_params = []} {
    return
  }
}

module attributes {stable_mosaic.version = 11 : i64} {
  func.func @_fused_gcn_kernel(%arg0: i32, %arg1: i32, %arg2: i32, %arg3: memref<16x16xbf16, #tpu.memory_space<vmem>>, %arg4: memref<16x128xbf16, #tpu.memory_space<vmem>>, %arg5: memref<128x128xbf16, #tpu.memory_space<vmem>>, %arg6: memref<1x128xf32, #tpu.memory_space<vmem>>, %arg7: memref<16x128xbf16, #tpu.memory_space<vmem>>, %arg8: memref<16x128xf32, #tpu.memory_space<vmem>>) attributes {dimension_semantics = [#tpu.dimension_semantics<parallel>, #tpu.dimension_semantics<parallel>, #tpu.dimension_semantics<arbitrary>], iteration_bounds = array<i64: 1, 1, 1>, scalar_prefetch = 0 : i64, scratch_operands = 1 : i64, tpu.core_type = #tpu.core_type<tc>, window_params = [{transform_indices = @transform_0, window_bounds = array<i64: 16, 16>}, {transform_indices = @transform_1, window_bounds = array<i64: 16, 128>}, {transform_indices = @transform_2, window_bounds = array<i64: 128, 128>}, {transform_indices = @transform_3, window_bounds = array<i64: 1, 128>}, {transform_indices = @transform_4, window_bounds = array<i64: 16, 128>}]} {
    %c0_i32 = arith.constant 0 : i32
    %0 = arith.cmpi eq, %arg2, %c0_i32 : i32
    %1 = arith.extui %0 : i1 to i32
    %c0_i32_0 = arith.constant 0 : i32
    %2 = arith.cmpi ne, %1, %c0_i32_0 : i32
    scf.if %2 {
      %cst_13 = arith.constant 0.000000e+00 : f32
      %15 = vector.broadcast %cst_13 : f32 to vector<16x128xf32>
      %c0_14 = arith.constant 0 : index
      %c0_15 = arith.constant 0 : index
      %16 = vector.load %arg8[%c0_14, %c0_15] : memref<16x128xf32, #tpu.memory_space<vmem>>, vector<16x128xf32>
      tpu.vector_store %arg8[%c0_14, %c0_15], %15 {strides = array<i32>} : memref<16x128xf32, #tpu.memory_space<vmem>>, vector<16x128xf32>,
    } else {
    }
    %c0 = arith.constant 0 : index
    %c0_1 = arith.constant 0 : index
    %3 = vector.load %arg4[%c0, %c0_1] : memref<16x128xbf16, #tpu.memory_space<vmem>>, vector<16x128xbf16>
    %c0_2 = arith.constant 0 : index
    %c0_3 = arith.constant 0 : index
    %4 = vector.load %arg5[%c0_2, %c0_3] : memref<128x128xbf16, #tpu.memory_space<vmem>>, vector<128x128xbf16>
    %cst = arith.constant dense<0.000000e+00> : vector<16x128xf32>
    %5 = tpu.matmul %3, %4, %cst {dimension_numbers = #tpu.dot_dimension_numbers<[1], [0], [0], [1], [0, 0, 1, 1], [], []>} : vector<16x128xbf16>, vector<128x128xbf16>, vector<16x128xf32> -> vector<16x128xf32>
    %c0_4 = arith.constant 0 : index
    %c0_5 = arith.constant 0 : index
    %6 = vector.load %arg8[%c0_4, %c0_5] : memref<16x128xf32, #tpu.memory_space<vmem>>, vector<16x128xf32>
    %c0_6 = arith.constant 0 : index
    %c0_7 = arith.constant 0 : index
    %7 = vector.load %arg3[%c0_6, %c0_7] : memref<16x16xbf16, #tpu.memory_space<vmem>>, vector<16x16xbf16>
    %8 = arith.truncf %5 : vector<16x128xf32> to vector<16x128xbf16>
    %cst_8 = arith.constant dense<0.000000e+00> : vector<16x128xf32>
    %9 = tpu.matmul %7, %8, %cst_8 {dimension_numbers = #tpu.dot_dimension_numbers<[1], [0], [0], [1], [0, 0, 1, 1], [], []>} : vector<16x16xbf16>, vector<16x128xbf16>, vector<16x128xf32> -> vector<16x128xf32>
    %10 = arith.addf %6, %9 : vector<16x128xf32>
    %c0_9 = arith.constant 0 : index
    %c0_10 = arith.constant 0 : index
    %11 = vector.load %arg8[%c0_9, %c0_10] : memref<16x128xf32, #tpu.memory_space<vmem>>, vector<16x128xf32>
    tpu.vector_store %arg8[%c0_9, %c0_10], %10 {strides = array<i32>} : memref<16x128xf32, #tpu.memory_space<vmem>>, vector<16x128xf32>,
    %c0_i32_11 = arith.constant 0 : i32
    %12 = arith.cmpi eq, %arg2, %c0_i32_11 : i32
    %13 = arith.extui %12 : i1 to i32
    %c0_i32_12 = arith.constant 0 : i32
    %14 = arith.cmpi ne, %13, %c0_i32_12 : i32
    scf.if %14 {
      %c0_13 = arith.constant 0 : index
      %c0_14 = arith.constant 0 : index
      %15 = vector.load %arg8[%c0_13, %c0_14] : memref<16x128xf32, #tpu.memory_space<vmem>>, vector<16x128xf32>
      %c0_15 = arith.constant 0 : index
      %c0_16 = arith.constant 0 : index
      %16 = vector.load %arg6[%c0_15, %c0_16] : memref<1x128xf32, #tpu.memory_space<vmem>>, vector<1x128xf32>
      %17 = vector.broadcast %16 : vector<1x128xf32> to vector<16x128xf32>
      %18 = arith.addf %15, %17 : vector<16x128xf32>
      %cst_17 = arith.constant 0.000000e+00 : f32
      %19 = vector.broadcast %cst_17 : f32 to vector<16x128xf32>
      %20 = arith.maximumf %18, %19 : vector<16x128xf32>
      %21 = arith.truncf %20 : vector<16x128xf32> to vector<16x128xbf16>
      %c0_18 = arith.constant 0 : index
      %c0_19 = arith.constant 0 : index
      %22 = vector.load %arg7[%c0_18, %c0_19] : memref<16x128xbf16, #tpu.memory_space<vmem>>, vector<16x128xbf16>
      tpu.vector_store %arg7[%c0_18, %c0_19], %21 {strides = array<i32>} : memref<16x128xbf16, #tpu.memory_space<vmem>>, vector<16x128xbf16>,
    } else {
    }
    return
  }
  func.func @transform_0(%arg0: i32, %arg1: i32, %arg2: i32) -> (i32, i32) {
    %c0_i32 = arith.constant 0 : i32
    return %arg0, %arg2 : i32, i32
  }
  func.func @transform_1(%arg0: i32, %arg1: i32, %arg2: i32) -> (i32, i32) {
    %c0_i32 = arith.constant 0 : i32
    %c0_i32_0 = arith.constant 0 : i32
    return %arg2, %c0_i32 : i32, i32
  }
  func.func @transform_2(%arg0: i32, %arg1: i32, %arg2: i32) -> (i32, i32) {
    %c0_i32 = arith.constant 0 : i32
    %c0_i32_0 = arith.constant 0 : i32
    return %c0_i32, %arg1 : i32, i32
  }
  func.func @transform_3(%arg0: i32, %arg1: i32, %arg2: i32) -> (i32, i32) {
    %c0_i32 = arith.constant 0 : i32
    %c0_i32_0 = arith.constant 0 : i32
    return %c0_i32, %arg1 : i32, i32
  }
  func.func @transform_4(%arg0: i32, %arg1: i32, %arg2: i32) -> (i32, i32) {
    %c0_i32 = arith.constant 0 : i32
    return %arg0, %arg1 : i32, i32
  }
}

module attributes {stable_mosaic.version = 11 : i64} {
  func.func @_tail_kernel(%arg0: i32, %arg1: memref<8x16xbf16, #tpu.memory_space<vmem>>, %arg2: memref<16x128xbf16, #tpu.memory_space<vmem>>, %arg3: memref<128x128xbf16, #tpu.memory_space<vmem>>, %arg4: memref<1x128xf32, #tpu.memory_space<vmem>>, %arg5: memref<128x128xbf16, #tpu.memory_space<vmem>>, %arg6: memref<1x128xf32, #tpu.memory_space<vmem>>, %arg7: memref<8x128xf32, #tpu.memory_space<vmem>>) attributes {dimension_semantics = [#tpu.dimension_semantics<arbitrary>], iteration_bounds = array<i64: 1>, scalar_prefetch = 0 : i64, scratch_operands = 0 : i64, tpu.core_type = #tpu.core_type<tc>, window_params = [{pipeline_mode = #tpu.pipeline_mode<synchronous>, transform_indices = @transform_0, window_bounds = array<i64: 8, 16>}, {pipeline_mode = #tpu.pipeline_mode<synchronous>, transform_indices = @transform_1, window_bounds = array<i64: 16, 128>}, {pipeline_mode = #tpu.pipeline_mode<synchronous>, transform_indices = @transform_2, window_bounds = array<i64: 128, 128>}, {pipeline_mode = #tpu.pipeline_mode<synchronous>, transform_indices = @transform_3, window_bounds = array<i64: 1, 128>}, {pipeline_mode = #tpu.pipeline_mode<synchronous>, transform_indices = @transform_4, window_bounds = array<i64: 128, 128>}, {pipeline_mode = #tpu.pipeline_mode<synchronous>, transform_indices = @transform_5, window_bounds = array<i64: 1, 128>}, {pipeline_mode = #tpu.pipeline_mode<synchronous>, transform_indices = @transform_6, window_bounds = array<i64: 8, 128>}]} {
    %c0 = arith.constant 0 : index
    %c0_0 = arith.constant 0 : index
    %0 = vector.load %arg1[%c0, %c0_0] : memref<8x16xbf16, #tpu.memory_space<vmem>>, vector<8x16xbf16>
    %c0_1 = arith.constant 0 : index
    %c0_2 = arith.constant 0 : index
    %1 = vector.load %arg2[%c0_1, %c0_2] : memref<16x128xbf16, #tpu.memory_space<vmem>>, vector<16x128xbf16>
    %cst = arith.constant dense<0.000000e+00> : vector<8x128xf32>
    %2 = tpu.matmul %0, %1, %cst {dimension_numbers = #tpu.dot_dimension_numbers<[1], [0], [0], [1], [0, 0, 1, 1], [], []>} : vector<8x16xbf16>, vector<16x128xbf16>, vector<8x128xf32> -> vector<8x128xf32>
    %3 = arith.truncf %2 : vector<8x128xf32> to vector<8x128xbf16>
    %c0_3 = arith.constant 0 : index
    %c0_4 = arith.constant 0 : index
    %4 = vector.load %arg3[%c0_3, %c0_4] : memref<128x128xbf16, #tpu.memory_space<vmem>>, vector<128x128xbf16>
    %cst_5 = arith.constant dense<0.000000e+00> : vector<8x128xf32>
    %5 = tpu.matmul %3, %4, %cst_5 {dimension_numbers = #tpu.dot_dimension_numbers<[1], [0], [0], [1], [0, 0, 1, 1], [], []>} : vector<8x128xbf16>, vector<128x128xbf16>, vector<8x128xf32> -> vector<8x128xf32>
    %c0_6 = arith.constant 0 : index
    %c0_7 = arith.constant 0 : index
    %6 = vector.load %arg4[%c0_6, %c0_7] : memref<1x128xf32, #tpu.memory_space<vmem>>, vector<1x128xf32>
    %7 = vector.broadcast %6 : vector<1x128xf32> to vector<8x128xf32>
    %8 = arith.addf %5, %7 : vector<8x128xf32>
    %cst_8 = arith.constant 0.000000e+00 : f32
    %9 = vector.broadcast %cst_8 : f32 to vector<8x128xf32>
    %10 = arith.maximumf %8, %9 : vector<8x128xf32>
    %11 = arith.truncf %10 : vector<8x128xf32> to vector<8x128xbf16>
    %c0_9 = arith.constant 0 : index
    %c0_10 = arith.constant 0 : index
    %12 = vector.load %arg5[%c0_9, %c0_10] : memref<128x128xbf16, #tpu.memory_space<vmem>>, vector<128x128xbf16>
    %cst_11 = arith.constant dense<0.000000e+00> : vector<8x128xf32>
    %13 = tpu.matmul %11, %12, %cst_11 {dimension_numbers = #tpu.dot_dimension_numbers<[1], [0], [0], [1], [0, 0, 1, 1], [], []>} : vector<8x128xbf16>, vector<128x128xbf16>, vector<8x128xf32> -> vector<8x128xf32>
    %c0_12 = arith.constant 0 : index
    %c0_13 = arith.constant 0 : index
    %14 = vector.load %arg6[%c0_12, %c0_13] : memref<1x128xf32, #tpu.memory_space<vmem>>, vector<1x128xf32>
    %15 = vector.broadcast %14 : vector<1x128xf32> to vector<8x128xf32>
    %16 = arith.addf %13, %15 : vector<8x128xf32>
    %c0_14 = arith.constant 0 : index
    %c0_15 = arith.constant 0 : index
    %17 = vector.load %arg7[%c0_14, %c0_15] : memref<8x128xf32, #tpu.memory_space<vmem>>, vector<8x128xf32>
    tpu.vector_store %arg7[%c0_14, %c0_15], %16 {strides = array<i32>} : memref<8x128xf32, #tpu.memory_space<vmem>>, vector<8x128xf32>,
    return
  }
  func.func @transform_0(%arg0: i32) -> (i32, i32) {
    %c0_i32 = arith.constant 0 : i32
    %c0_i32_0 = arith.constant 0 : i32
    %c0_i32_1 = arith.constant 0 : i32
    return %c0_i32, %c0_i32_0 : i32, i32
  }
  func.func @transform_1(%arg0: i32) -> (i32, i32) {
    %c0_i32 = arith.constant 0 : i32
    %c0_i32_0 = arith.constant 0 : i32
    %c0_i32_1 = arith.constant 0 : i32
    return %c0_i32, %c0_i32_0 : i32, i32
  }
  func.func @transform_2(%arg0: i32) -> (i32, i32) {
    %c0_i32 = arith.constant 0 : i32
    %c0_i32_0 = arith.constant 0 : i32
    %c0_i32_1 = arith.constant 0 : i32
    return %c0_i32, %c0_i32_0 : i32, i32
  }
  func.func @transform_3(%arg0: i32) -> (i32, i32) {
    %c0_i32 = arith.constant 0 : i32
    %c0_i32_0 = arith.constant 0 : i32
    %c0_i32_1 = arith.constant 0 : i32
    return %c0_i32, %c0_i32_0 : i32, i32
  }
  func.func @transform_4(%arg0: i32) -> (i32, i32) {
    %c0_i32 = arith.constant 0 : i32
    %c0_i32_0 = arith.constant 0 : i32
    %c0_i32_1 = arith.constant 0 : i32
    return %c0_i32, %c0_i32_0 : i32, i32
  }
  func.func @transform_5(%arg0: i32) -> (i32, i32) {
    %c0_i32 = arith.constant 0 : i32
    %c0_i32_0 = arith.constant 0 : i32
    %c0_i32_1 = arith.constant 0 : i32
    return %c0_i32, %c0_i32_0 : i32, i32
  }
  func.func @transform_6(%arg0: i32) -> (i32, i32) {
    %c0_i32 = arith.constant 0 : i32
    %c0_i32_0 = arith.constant 0 : i32
    %c0_i32_1 = arith.constant 0 : i32
    return %c0_i32, %c0_i32_0 : i32, i32
  }
}

module attributes {stable_mosaic.version = 11 : i64} {
  func.func @_agg_kernel(%arg0: i32, %arg1: i32, %arg2: i32, %arg3: memref<16x16xbf16, #tpu.memory_space<vmem>>, %arg4: memref<16x128xbf16, #tpu.memory_space<vmem>>, %arg5: memref<1x128xf32, #tpu.memory_space<vmem>>, %arg6: memref<16x128xbf16, #tpu.memory_space<vmem>>, %arg7: memref<16x128xf32, #tpu.memory_space<vmem>>) attributes {dimension_semantics = [#tpu.dimension_semantics<parallel>, #tpu.dimension_semantics<parallel>, #tpu.dimension_semantics<arbitrary>], iteration_bounds = array<i64: 1, 1, 1>, scalar_prefetch = 0 : i64, scratch_operands = 1 : i64, tpu.core_type = #tpu.core_type<tc>, window_params = [{transform_indices = @transform_0, window_bounds = array<i64: 16, 16>}, {transform_indices = @transform_1, window_bounds = array<i64: 16, 128>}, {transform_indices = @transform_2, window_bounds = array<i64: 1, 128>}, {transform_indices = @transform_3, window_bounds = array<i64: 16, 128>}]} {
    %c0_i32 = arith.constant 0 : i32
    %0 = arith.cmpi eq, %arg2, %c0_i32 : i32
    %1 = arith.extui %0 : i1 to i32
    %c0_i32_0 = arith.constant 0 : i32
    %2 = arith.cmpi ne, %1, %c0_i32_0 : i32
    scf.if %2 {
      %cst_10 = arith.constant 0.000000e+00 : f32
      %12 = vector.broadcast %cst_10 : f32 to vector<16x128xf32>
      %c0_11 = arith.constant 0 : index
      %c0_12 = arith.constant 0 : index
      %13 = vector.load %arg7[%c0_11, %c0_12] : memref<16x128xf32, #tpu.memory_space<vmem>>, vector<16x128xf32>
      tpu.vector_store %arg7[%c0_11, %c0_12], %12 {strides = array<i32>} : memref<16x128xf32, #tpu.memory_space<vmem>>, vector<16x128xf32>,
    } else {
    }
    %c0 = arith.constant 0 : index
    %c0_1 = arith.constant 0 : index
    %3 = vector.load %arg7[%c0, %c0_1] : memref<16x128xf32, #tpu.memory_space<vmem>>, vector<16x128xf32>
    %c0_2 = arith.constant 0 : index
    %c0_3 = arith.constant 0 : index
    %4 = vector.load %arg3[%c0_2, %c0_3] : memref<16x16xbf16, #tpu.memory_space<vmem>>, vector<16x16xbf16>
    %c0_4 = arith.constant 0 : index
    %c0_5 = arith.constant 0 : index
    %5 = vector.load %arg4[%c0_4, %c0_5] : memref<16x128xbf16, #tpu.memory_space<vmem>>, vector<16x128xbf16>
    %cst = arith.constant dense<0.000000e+00> : vector<16x128xf32>
    %6 = tpu.matmul %4, %5, %cst {dimension_numbers = #tpu.dot_dimension_numbers<[1], [0], [0], [1], [0, 0, 1, 1], [], []>} : vector<16x16xbf16>, vector<16x128xbf16>, vector<16x128xf32> -> vector<16x128xf32>
    %7 = arith.addf %3, %6 : vector<16x128xf32>
    %c0_6 = arith.constant 0 : index
    %c0_7 = arith.constant 0 : index
    %8 = vector.load %arg7[%c0_6, %c0_7] : memref<16x128xf32, #tpu.memory_space<vmem>>, vector<16x128xf32>
    tpu.vector_store %arg7[%c0_6, %c0_7], %7 {strides = array<i32>} : memref<16x128xf32, #tpu.memory_space<vmem>>, vector<16x128xf32>,
    %c0_i32_8 = arith.constant 0 : i32
    %9 = arith.cmpi eq, %arg2, %c0_i32_8 : i32
    %10 = arith.extui %9 : i1 to i32
    %c0_i32_9 = arith.constant 0 : i32
    %11 = arith.cmpi ne, %10, %c0_i32_9 : i32
    scf.if %11 {
      %c0_10 = arith.constant 0 : index
      %c0_11 = arith.constant 0 : index
      %12 = vector.load %arg7[%c0_10, %c0_11] : memref<16x128xf32, #tpu.memory_space<vmem>>, vector<16x128xf32>
      %c0_12 = arith.constant 0 : index
      %c0_13 = arith.constant 0 : index
      %13 = vector.load %arg5[%c0_12, %c0_13] : memref<1x128xf32, #tpu.memory_space<vmem>>, vector<1x128xf32>
      %14 = vector.broadcast %13 : vector<1x128xf32> to vector<16x128xf32>
      %15 = arith.addf %12, %14 : vector<16x128xf32>
      %cst_14 = arith.constant 0.000000e+00 : f32
      %16 = vector.broadcast %cst_14 : f32 to vector<16x128xf32>
      %17 = arith.maximumf %15, %16 : vector<16x128xf32>
      %18 = arith.truncf %17 : vector<16x128xf32> to vector<16x128xbf16>
      %c0_15 = arith.constant 0 : index
      %c0_16 = arith.constant 0 : index
      %19 = vector.load %arg6[%c0_15, %c0_16] : memref<16x128xbf16, #tpu.memory_space<vmem>>, vector<16x128xbf16>
      tpu.vector_store %arg6[%c0_15, %c0_16], %18 {strides = array<i32>} : memref<16x128xbf16, #tpu.memory_space<vmem>>, vector<16x128xbf16>,
    } else {
    }
    return
  }
  func.func @transform_0(%arg0: i32, %arg1: i32, %arg2: i32) -> (i32, i32) {
    %c0_i32 = arith.constant 0 : i32
    return %arg0, %arg2 : i32, i32
  }
  func.func @transform_1(%arg0: i32, %arg1: i32, %arg2: i32) -> (i32, i32) {
    %c0_i32 = arith.constant 0 : i32
    return %arg2, %arg1 : i32, i32
  }
  func.func @transform_2(%arg0: i32, %arg1: i32, %arg2: i32) -> (i32, i32) {
    %c0_i32 = arith.constant 0 : i32
    %c0_i32_0 = arith.constant 0 : i32
    return %c0_i32, %arg1 : i32, i32
  }
  func.func @transform_3(%arg0: i32, %arg1: i32, %arg2: i32) -> (i32, i32) {
    %c0_i32 = arith.constant 0 : i32
    return %arg0, %arg1 : i32, i32
  }
}

</mosaic_0001>

<llo_original>
// kernel: gnn_forward.5
$region0: #{gnn_forward.5}
  #allocation0 [shape = 'u32[]', space=smem, size = 0x4, offset = 0x4, fixed_abs, tag = 'smem constant byte address 0x4 - core index']
  #allocation1 [shape = 'u32[144,128]{1,0:T(1,128)}', space=vmem, size = 0x12000, scoped, tag = 'internal scratch']
  %s0 = inlined_call_operand.vmem [shape: bf16[8,16], index: 0, kind: input, shape index: {}]
  %s1 = inlined_call_operand.vmem [shape: bf16[16,128], index: 1, kind: input, shape index: {}]
  %s2 = inlined_call_operand.vmem [shape: bf16[128,128], index: 2, kind: input, shape index: {}]
  %s3 = inlined_call_operand.vmem [shape: f32[1,128], index: 3, kind: input, shape index: {}]
  %s4 = inlined_call_operand.vmem [shape: bf16[128,128], index: 4, kind: input, shape index: {}]
  %s5 = inlined_call_operand.vmem [shape: f32[1,128], index: 5, kind: input, shape index: {}]
  %s6 = inlined_call_operand.vmem [shape: f32[8,128], index: 6, kind: output, shape index: {}]
  %s7 = sld [smem:[#allocation0]]
  $region34: #{gnn_forward.5} parent=0
    _
  %s9 = ssub.s32 1, %s7
  %s10 = scalar_select 0, %s9, %s7
  // Predicated region
  $region2: #{gnn_forward.5} parent=0 // pred_check
    _
  $region3: #{gnn_forward.5} parent=0 // pred_check_branch
    %12 = sbr.rel (0) target = $region5
  $region4: #{gnn_forward.5} parent=0 // pred_region
    _
  $region5: #{gnn_forward.5} parent=0 // pred_fallthru
    _
  // Predicated region
  $region6: #{gnn_forward.5} parent=0 // pred_check
    _
  $region7: #{gnn_forward.5} parent=0 // pred_check_branch
    %14 = sbr.rel (0) target = $region9
  $region8: #{gnn_forward.5} parent=0 // pred_region
    _
  $region9: #{gnn_forward.5} parent=0 // pred_fallthru
    _
  // Predicated region
  $region10: #{gnn_forward.5} parent=0 // pred_check
    _
  $region11: #{gnn_forward.5} parent=0 // pred_check_branch
    %16 = sbr.rel (0) target = $region13
  $region12: #{gnn_forward.5} parent=0 // pred_region
    _
  $region13: #{gnn_forward.5} parent=0 // pred_fallthru
    _
  // Predicated region
  $region14: #{gnn_forward.5} parent=0 // pred_check
    _
  $region15: #{gnn_forward.5} parent=0 // pred_check_branch
    %18 = sbr.rel (0) target = $region17
  $region16: #{gnn_forward.5} parent=0 // pred_region
    _
  $region17: #{gnn_forward.5} parent=0 // pred_fallthru
    _
  // Predicated region
  $region18: #{gnn_forward.5} parent=0 // pred_check
    _
  $region19: #{gnn_forward.5} parent=0 // pred_check_branch
    %20 = sbr.rel (0) target = $region21
  $region20: #{gnn_forward.5} parent=0 // pred_region
    _
  $region21: #{gnn_forward.5} parent=0 // pred_fallthru
    _
  // Predicated region
  $region22: #{gnn_forward.5} parent=0 // pred_check
    _
  $region23: #{gnn_forward.5} parent=0 // pred_check_branch
    %22 = sbr.rel (0) target = $region25
  $region24: #{gnn_forward.5} parent=0 // pred_region
    _
  $region25: #{gnn_forward.5} parent=0 // pred_fallthru
    _
  %v24 = vld [vmem:[%s0] sm:$0xf]
  %v25 = vld [vmem:[%s1] sm:$0xf]
  %v26 = vld [vmem:[%s1 + $0x4] sm:$0xf]
  %v29 = vunpack.c.l.b16 %v25
  %v30 = vunpack.c.l.b16 %v26
  %v31 = vpack.c.b16 %v30, %v29
  %vm33 = vcmask 130048
  %v35 = vsel %vm33, %v24, 0
  %37 = vmatprep.subr.bf16.mxu0 0
  %38 = vmatpush1.bf16.msra.mxu0 %v31
  %39 = vmatprep.subr.bf16.mxu0 0
  %40 = vmatpush1.bf16.msra.mxu0 0
  %41 = vmatprep.subr.bf16.mxu0 0
  %42 = vmatpush1.bf16.msra.mxu0 0
  %43 = vmatprep.subr.bf16.mxu0 0
  %44 = vmatpush1.bf16.msra.mxu0 0
  %45 = vmatprep.subr.bf16.mxu0 0
  %46 = vmatpush1.bf16.msra.mxu0 0
  %47 = vmatprep.subr.bf16.mxu0 0
  %48 = vmatpush1.bf16.msra.mxu0 0
  %49 = vmatprep.subr.bf16.mxu0 0
  %50 = vmatpush1.bf16.msra.mxu0 0
  %51 = vmatprep.subr.bf16.mxu0 0
  %52 = vmatpush1.bf16.msra.mxu0 0
  %53 = vmatprep.subr.bf16.mxu0 0
  %54 = vmatpush1.bf16.msra.mxu0 0
  %55 = vmatprep.subr.bf16.mxu0 0
  %56 = vmatpush1.bf16.msra.mxu0 0
  %57 = vmatprep.subr.bf16.mxu0 0
  %58 = vmatpush1.bf16.msra.mxu0 0
  %59 = vmatprep.subr.bf16.mxu0 0
  %60 = vmatpush1.bf16.msra.mxu0 0
  %61 = vmatprep.subr.bf16.mxu0 0
  %62 = vmatpush1.bf16.msra.mxu0 0
  %63 = vmatprep.subr.bf16.mxu0 0
  %64 = vmatpush1.bf16.msra.mxu0 0
  %65 = vmatprep.subr.bf16.mxu0 0
  %66 = vmatpush1.bf16.msra.mxu0 0
  %67 = vmatprep.subr.bf16.mxu0 0
  %68 = vmatpush1.bf16.msra.mxu0 0
  %69 = vmatprep.mubr.bf16.mxu0 0
  %70 = vmatmul.mubr.bf16.gmra.mrb[0].mxu0 %v35
  %v71 = vpop.f32.mrb[0].mxu0
  %v72 = vadd.f32 0.0, %v71
  %v73 = vpop.f32.mrb[0].mxu0
  %v74 = vpop.f32.mrb[0].mxu0
  %v75 = vpop.f32.mrb[0].mxu0
  %76 = vdwg.mxu0
  %v77 = vpack.c.bf16 %v72, %v72
  %v78 = vld [vmem:[%s2] sm:$0xf]
  %v79 = vld [vmem:[%s2 + $0x4] sm:$0xf]
  %v80 = vld [vmem:[%s2 + $0x8] sm:$0xf]
  %v81 = vld [vmem:[%s2 + $0xc] sm:$0xf]
  %v82 = vld [vmem:[%s2 + $0x10] sm:$0xf]
  %v83 = vld [vmem:[%s2 + $0x14] sm:$0xf]
  %v84 = vld [vmem:[%s2 + $0x18] sm:$0xf]
  %v85 = vld [vmem:[%s2 + $0x1c] sm:$0xf]
  %v86 = vld [vmem:[%s2 + $0x20] sm:$0xf]
  %v87 = vld [vmem:[%s2 + $0x24] sm:$0xf]
  %v88 = vld [vmem:[%s2 + $0x28] sm:$0xf]
  %v89 = vld [vmem:[%s2 + $0x2c] sm:$0xf]
  %v90 = vld [vmem:[%s2 + $0x30] sm:$0xf]
  %v91 = vld [vmem:[%s2 + $0x34] sm:$0xf]
  %v92 = vld [vmem:[%s2 + $0x38] sm:$0xf]
  %v93 = vld [vmem:[%s2 + $0x3c] sm:$0xf]
  %v94 = vld [vmem:[%s3] sm:$0x1]
  %v96 = vlaneseq
  %v97 = vshrl.u32 %v96, 7
  %v98 = vsub.s32 0, %v97
  %v99 = vrot.slane %v94, %v98
  %v117 = vunpack.c.l.b16 %v78
  %v118 = vunpack.c.l.b16 %v79
  %v119 = vunpack.c.l.b16 %v80
  %v120 = vunpack.c.l.b16 %v81
  %v121 = vunpack.c.l.b16 %v82
  %v122 = vunpack.c.l.b16 %v83
  %v123 = vunpack.c.l.b16 %v84
  %v124 = vunpack.c.l.b16 %v85
  %v125 = vunpack.c.l.b16 %v86
  %v126 = vunpack.c.l.b16 %v87
  %v127 = vunpack.c.l.b16 %v88
  %v128 = vunpack.c.l.b16 %v89
  %v129 = vunpack.c.l.b16 %v90
  %v130 = vunpack.c.l.b16 %v91
  %v131 = vunpack.c.l.b16 %v92
  %v132 = vunpack.c.l.b16 %v93
  %v133 = vpack.c.b16 %v118, %v117
  %v134 = vpack.c.b16 %v120, %v119
  %v135 = vpack.c.b16 %v122, %v121
  %v136 = vpack.c.b16 %v124, %v123
  %v137 = vpack.c.b16 %v126, %v125
  %v138 = vpack.c.b16 %v128, %v127
  %v139 = vpack.c.b16 %v130, %v129
  %v140 = vpack.c.b16 %v132, %v131
  %149 = vmatprep.subr.bf16.mxu0 0
  %150 = vmatpush1.bf16.msra.mxu0 %v133
  %151 = vmatprep.subr.bf16.mxu0 0
  %152 = vmatpush1.bf16.msra.mxu0 %v134
  %153 = vmatprep.subr.bf16.mxu0 0
  %154 = vmatpush1.bf16.msra.mxu0 %v135
  %155 = vmatprep.subr.bf16.mxu0 0
  %156 = vmatpush1.bf16.msra.mxu0 %v136
  %157 = vmatprep.subr.bf16.mxu0 0
  %158 = vmatpush1.bf16.msra.mxu0 %v137
  %159 = vmatprep.subr.bf16.mxu0 0
  %160 = vmatpush1.bf16.msra.mxu0 %v138
  %161 = vmatprep.subr.bf16.mxu0 0
  %162 = vmatpush1.bf16.msra.mxu0 %v139
  %163 = vmatprep.subr.bf16.mxu0 0
  %164 = vmatpush1.bf16.msra.mxu0 %v140
  %165 = vmatprep.subr.bf16.mxu0 0
  %166 = vmatpush1.bf16.msra.mxu0 0
  %167 = vmatprep.subr.bf16.mxu0 0
  %168 = vmatpush1.bf16.msra.mxu0 0
  %169 = vmatprep.subr.bf16.mxu0 0
  %170 = vmatpush1.bf16.msra.mxu0 0
  %171 = vmatprep.subr.bf16.mxu0 0
  %172 = vmatpush1.bf16.msra.mxu0 0
  %173 = vmatprep.subr.bf16.mxu0 0
  %174 = vmatpush1.bf16.msra.mxu0 0
  %175 = vmatprep.subr.bf16.mxu0 0
  %176 = vmatpush1.bf16.msra.mxu0 0
  %177 = vmatprep.subr.bf16.mxu0 0
  %178 = vmatpush1.bf16.msra.mxu0 0
  %179 = vmatprep.subr.bf16.mxu0 0
  %180 = vmatpush1.bf16.msra.mxu0 0
  %181 = vmatprep.mubr.bf16.mxu0 0
  %182 = vmatmul.mubr.bf16.gmra.mrb[0].mxu0 %v77
  %v183 = vpop.f32.mrb[0].mxu0
  %v184 = vadd.f32 %v99, %v183
  %v185 = vpop.f32.mrb[0].mxu0
  %v186 = vpop.f32.mrb[0].mxu0
  %v187 = vpop.f32.mrb[0].mxu0
  %188 = vdwg.mxu0
  %v189 = vmax.f32 %v184, 0.0
  %v190 = vpack.c.bf16 %v189, %v189
  %v191 = vld [vmem:[%s4] sm:$0xf]
  %v192 = vld [vmem:[%s4 + $0x4] sm:$0xf]
  %v193 = vld [vmem:[%s4 + $0x8] sm:$0xf]
  %v194 = vld [vmem:[%s4 + $0xc] sm:$0xf]
  %v195 = vld [vmem:[%s4 + $0x10] sm:$0xf]
  %v196 = vld [vmem:[%s4 + $0x14] sm:$0xf]
  %v197 = vld [vmem:[%s4 + $0x18] sm:$0xf]
  %v198 = vld [vmem:[%s4 + $0x1c] sm:$0xf]
  %v199 = vld [vmem:[%s4 + $0x20] sm:$0xf]
  %v200 = vld [vmem:[%s4 + $0x24] sm:$0xf]
  %v201 = vld [vmem:[%s4 + $0x28] sm:$0xf]
  %v202 = vld [vmem:[%s4 + $0x2c] sm:$0xf]
  %v203 = vld [vmem:[%s4 + $0x30] sm:$0xf]
  %v204 = vld [vmem:[%s4 + $0x34] sm:$0xf]
  %v205 = vld [vmem:[%s4 + $0x38] sm:$0xf]
  %v206 = vld [vmem:[%s4 + $0x3c] sm:$0xf]
  %v207 = vld [vmem:[%s5] sm:$0x1]
  %v209 = vlaneseq
  %v210 = vshrl.u32 %v209, 7
  %v211 = vsub.s32 0, %v210
  %v212 = vrot.slane %v207, %v211
  %v230 = vunpack.c.l.b16 %v191
  %v231 = vunpack.c.l.b16 %v192
  %v232 = vunpack.c.l.b16 %v193
  %v233 = vunpack.c.l.b16 %v194
  %v234 = vunpack.c.l.b16 %v195
  %v235 = vunpack.c.l.b16 %v196
  %v236 = vunpack.c.l.b16 %v197
  %v237 = vunpack.c.l.b16 %v198
  %v238 = vunpack.c.l.b16 %v199
  %v239 = vunpack.c.l.b16 %v200
  %v240 = vunpack.c.l.b16 %v201
  %v241 = vunpack.c.l.b16 %v202
  %v242 = vunpack.c.l.b16 %v203
  %v243 = vunpack.c.l.b16 %v204
  %v244 = vunpack.c.l.b16 %v205
  %v245 = vunpack.c.l.b16 %v206
  %v246 = vpack.c.b16 %v231, %v230
  %v247 = vpack.c.b16 %v233, %v232
  %v248 = vpack.c.b16 %v235, %v234
  %v249 = vpack.c.b16 %v237, %v236
  %v250 = vpack.c.b16 %v239, %v238
  %v251 = vpack.c.b16 %v241, %v240
  %v252 = vpack.c.b16 %v243, %v242
  %v253 = vpack.c.b16 %v245, %v244
  %262 = vmatprep.subr.bf16.mxu0 0
  %263 = vmatpush1.bf16.msra.mxu0 %v246
  %264 = vmatprep.subr.bf16.mxu0 0
  %265 = vmatpush1.bf16.msra.mxu0 %v247
  %266 = vmatprep.subr.bf16.mxu0 0
  %267 = vmatpush1.bf16.msra.mxu0 %v248
  %268 = vmatprep.subr.bf16.mxu0 0
  %269 = vmatpush1.bf16.msra.mxu0 %v249
  %270 = vmatprep.subr.bf16.mxu0 0
  %271 = vmatpush1.bf16.msra.mxu0 %v250
  %272 = vmatprep.subr.bf16.mxu0 0
  %273 = vmatpush1.bf16.msra.mxu0 %v251
  %274 = vmatprep.subr.bf16.mxu0 0
  %275 = vmatpush1.bf16.msra.mxu0 %v252
  %276 = vmatprep.subr.bf16.mxu0 0
  %277 = vmatpush1.bf16.msra.mxu0 %v253
  %278 = vmatprep.subr.bf16.mxu0 0
  %279 = vmatpush1.bf16.msra.mxu0 0
  %280 = vmatprep.subr.bf16.mxu0 0
  %281 = vmatpush1.bf16.msra.mxu0 0
  %282 = vmatprep.subr.bf16.mxu0 0
  %283 = vmatpush1.bf16.msra.mxu0 0
  %284 = vmatprep.subr.bf16.mxu0 0
  %285 = vmatpush1.bf16.msra.mxu0 0
  %286 = vmatprep.subr.bf16.mxu0 0
  %287 = vmatpush1.bf16.msra.mxu0 0
  %288 = vmatprep.subr.bf16.mxu0 0
  %289 = vmatpush1.bf16.msra.mxu0 0
  %290 = vmatprep.subr.bf16.mxu0 0
  %291 = vmatpush1.bf16.msra.mxu0 0
  %292 = vmatprep.subr.bf16.mxu0 0
  %293 = vmatpush1.bf16.msra.mxu0 0
  %294 = vmatprep.mubr.bf16.mxu0 0
  %295 = vmatmul.mubr.bf16.gmra.mrb[0].mxu0 %v190
  %v296 = vpop.f32.mrb[0].mxu0
  %v297 = vadd.f32 %v212, %v296
  %v298 = vpop.f32.mrb[0].mxu0
  %v299 = vpop.f32.mrb[0].mxu0
  %v300 = vpop.f32.mrb[0].mxu0
  %301 = vdwg.mxu0
  %302 = vst [vmem:[%s6] sm:$0xff] %v297
  // Predicated region
  $region26: #{gnn_forward.5} parent=0 // pred_check
    _
  $region27: #{gnn_forward.5} parent=0 // pred_check_branch
    %304 = sbr.rel (0) target = $region29
  $region28: #{gnn_forward.5} parent=0 // pred_region
    _
  $region29: #{gnn_forward.5} parent=0 // pred_fallthru
    _
  // Predicated region
  $region30: #{gnn_forward.5} parent=0 // pred_check
    _
  $region31: #{gnn_forward.5} parent=0 // pred_check_branch
    %306 = sbr.rel (0) target = $region33
  $region32: #{gnn_forward.5} parent=0 // pred_region
    _
  $region33: #{gnn_forward.5} parent=0 // pred_fallthru
    _

// kernel: gnn_forward.4
$region0: #{gnn_forward.4}
  #allocation0 [shape = 'u32[]', space=smem, size = 0x4, offset = 0x4, fixed_abs, tag = 'smem constant byte address 0x4 - core index']
  #allocation1 [shape = 'u32[144,128]{1,0:T(1,128)}', space=vmem, size = 0x12000, scoped, tag = 'internal scratch']
  #allocation2 [shape = 'f32[16,128]{1,0:T(8,128)}', space=vmem, size = 0x2000, scoped, tag = 'scratch operand']
  %s0 = inlined_call_operand.vmem [shape: bf16[16,16], index: 0, kind: input, shape index: {}]
  %s1 = inlined_call_operand.vmem [shape: bf16[16,128], index: 1, kind: input, shape index: {}]
  %s2 = inlined_call_operand.vmem [shape: bf16[128,128], index: 2, kind: input, shape index: {}]
  %s3 = inlined_call_operand.vmem [shape: f32[1,128], index: 3, kind: input, shape index: {}]
  %s4 = inlined_call_operand.vmem [shape: bf16[16,128], index: 4, kind: output, shape index: {}]
  %s5 = sld [smem:[#allocation0]]
  $region34: #{gnn_forward.4} parent=0
    _
  %s7 = ssub.s32 1, %s5
  %s8 = scalar_select 0, %s7, %s5
  // Predicated region
  $region2: #{gnn_forward.4} parent=0 // pred_check
    _
  $region3: #{gnn_forward.4} parent=0 // pred_check_branch
    %10 = sbr.rel (0) target = $region5
  $region4: #{gnn_forward.4} parent=0 // pred_region
    _
  $region5: #{gnn_forward.4} parent=0 // pred_fallthru
    _
  // Predicated region
  $region6: #{gnn_forward.4} parent=0 // pred_check
    _
  $region7: #{gnn_forward.4} parent=0 // pred_check_branch
    %12 = sbr.rel (0) target = $region9
  $region8: #{gnn_forward.4} parent=0 // pred_region
    _
  $region9: #{gnn_forward.4} parent=0 // pred_fallthru
    _
  // Predicated region
  $region10: #{gnn_forward.4} parent=0 // pred_check
    _
  $region11: #{gnn_forward.4} parent=0 // pred_check_branch
    %14 = sbr.rel (0) target = $region13
  $region12: #{gnn_forward.4} parent=0 // pred_region
    _
  $region13: #{gnn_forward.4} parent=0 // pred_fallthru
    _
  // Predicated region
  $region14: #{gnn_forward.4} parent=0 // pred_check
    _
  $region15: #{gnn_forward.4} parent=0 // pred_check_branch
    %16 = sbr.rel (0) target = $region17
  $region16: #{gnn_forward.4} parent=0 // pred_region
    _
  $region17: #{gnn_forward.4} parent=0 // pred_fallthru
    _
  %p18 = scmp.eq.s32.totalorder 0, 0
  // Predicated region
  $region18: #{gnn_forward.4} parent=0 // pred_check
    %p19 = pneg %p18
  $region19: #{gnn_forward.4} parent=0 // pred_check_branch
    %21 = sbr.rel (%p19) target = $region21
  $region20: #{gnn_forward.4} parent=0 // pred_region
    %22 = vst [vmem:[#allocation2] sm:$0xff] 0.0
    %23 = vst [vmem:[#allocation2 + $0x8] sm:$0xff] 0.0
  $region21: #{gnn_forward.4} parent=0 // pred_fallthru
    _
  %v24 = vld [vmem:[%s1] sm:$0xf]
  %v25 = vld [vmem:[%s1 + $0x4] sm:$0xf]
  %v26 = vld [vmem:[%s2] sm:$0xf]
  %v27 = vld [vmem:[%s2 + $0x4] sm:$0xf]
  %v28 = vld [vmem:[%s2 + $0x8] sm:$0xf]
  %v29 = vld [vmem:[%s2 + $0xc] sm:$0xf]
  %v30 = vld [vmem:[%s2 + $0x10] sm:$0xf]
  %v31 = vld [vmem:[%s2 + $0x14] sm:$0xf]
  %v32 = vld [vmem:[%s2 + $0x18] sm:$0xf]
  %v33 = vld [vmem:[%s2 + $0x1c] sm:$0xf]
  %v34 = vld [vmem:[%s2 + $0x20] sm:$0xf]
  %v35 = vld [vmem:[%s2 + $0x24] sm:$0xf]
  %v36 = vld [vmem:[%s2 + $0x28] sm:$0xf]
  %v37 = vld [vmem:[%s2 + $0x2c] sm:$0xf]
  %v38 = vld [vmem:[%s2 + $0x30] sm:$0xf]
  %v39 = vld [vmem:[%s2 + $0x34] sm:$0xf]
  %v40 = vld [vmem:[%s2 + $0x38] sm:$0xf]
  %v41 = vld [vmem:[%s2 + $0x3c] sm:$0xf]
  %v44 = vunpack.c.l.b16 %v24
  %v45 = vunpack.c.l.b16 %v25
  %v46 = vpack.c.b16 %v45, %v44
  %v64 = vunpack.c.l.b16 %v26
  %v65 = vunpack.c.l.b16 %v27
  %v66 = vunpack.c.l.b16 %v28
  %v67 = vunpack.c.l.b16 %v29
  %v68 = vunpack.c.l.b16 %v30
  %v69 = vunpack.c.l.b16 %v31
  %v70 = vunpack.c.l.b16 %v32
  %v71 = vunpack.c.l.b16 %v33
  %v72 = vunpack.c.l.b16 %v34
  %v73 = vunpack.c.l.b16 %v35
  %v74 = vunpack.c.l.b16 %v36
  %v75 = vunpack.c.l.b16 %v37
  %v76 = vunpack.c.l.b16 %v38
  %v77 = vunpack.c.l.b16 %v39
  %v78 = vunpack.c.l.b16 %v40
  %v79 = vunpack.c.l.b16 %v41
  %v80 = vpack.c.b16 %v65, %v64
  %v81 = vpack.c.b16 %v67, %v66
  %v82 = vpack.c.b16 %v69, %v68
  %v83 = vpack.c.b16 %v71, %v70
  %v84 = vpack.c.b16 %v73, %v72
  %v85 = vpack.c.b16 %v75, %v74
  %v86 = vpack.c.b16 %v77, %v76
  %v87 = vpack.c.b16 %v79, %v78
  %96 = vmatprep.subr.bf16.mxu0 0
  %97 = vmatpush1.bf16.msra.mxu0 %v80
  %98 = vmatprep.subr.bf16.mxu0 0
  %99 = vmatpush1.bf16.msra.mxu0 %v81
  %100 = vmatprep.subr.bf16.mxu0 0
  %101 = vmatpush1.bf16.msra.mxu0 %v82
  %102 = vmatprep.subr.bf16.mxu0 0
  %103 = vmatpush1.bf16.msra.mxu0 %v83
  %104 = vmatprep.subr.bf16.mxu0 0
  %105 = vmatpush1.bf16.msra.mxu0 %v84
  %106 = vmatprep.subr.bf16.mxu0 0
  %107 = vmatpush1.bf16.msra.mxu0 %v85
  %108 = vmatprep.subr.bf16.mxu0 0
  %109 = vmatpush1.bf16.msra.mxu0 %v86
  %110 = vmatprep.subr.bf16.mxu0 0
  %111 = vmatpush1.bf16.msra.mxu0 %v87
  %112 = vmatprep.subr.bf16.mxu0 0
  %113 = vmatpush1.bf16.msra.mxu0 0
  %114 = vmatprep.subr.bf16.mxu0 0
  %115 = vmatpush1.bf16.msra.mxu0 0
  %116 = vmatprep.subr.bf16.mxu0 0
  %117 = vmatpush1.bf16.msra.mxu0 0
  %118 = vmatprep.subr.bf16.mxu0 0
  %119 = vmatpush1.bf16.msra.mxu0 0
  %120 = vmatprep.subr.bf16.mxu0 0
  %121 = vmatpush1.bf16.msra.mxu0 0
  %122 = vmatprep.subr.bf16.mxu0 0
  %123 = vmatpush1.bf16.msra.mxu0 0
  %124 = vmatprep.subr.bf16.mxu0 0
  %125 = vmatpush1.bf16.msra.mxu0 0
  %126 = vmatprep.subr.bf16.mxu0 0
  %127 = vmatpush1.bf16.msra.mxu0 0
  %128 = vmatprep.mubr.bf16.mxu0 0
  %129 = vmatmul.mubr.bf16.gmra.mrb[0].mxu0 %v46
  %v130 = vpop.f32.mrb[0].mxu0
  %v131 = vadd.f32 0.0, %v130
  %v132 = vpop.f32.mrb[0].mxu0
  %v133 = vpop.f32.mrb[0].mxu0
  %v134 = vadd.f32 0.0, %v133
  %v135 = vpop.f32.mrb[0].mxu0
  %136 = vdwg.mxu0
  %v137 = vld [vmem:[#allocation2] sm:$0xff]
  %v138 = vld [vmem:[#allocation2 + $0x8] sm:$0xff]
  %v139 = vld [vmem:[%s0] sm:$0xf]
  %v140 = vld [vmem:[%s0 + $0x4] sm:$0xf]
  %v141 = vpack.c.bf16 %v134, %v131
  %v144 = vunpack.c.l.b16 %v139
  %v145 = vunpack.c.l.b16 %v140
  %v146 = vpack.c.b16 %v145, %v144
  %vm147 = vcmask 130048
  %v149 = vsel %vm147, %v146, 0
  %151 = vmatprep.subr.bf16.mxu0 0
  %152 = vmatpush1.bf16.msra.mxu0 %v141
  %153 = vmatprep.subr.bf16.mxu0 0
  %154 = vmatpush1.bf16.msra.mxu0 0
  %155 = vmatprep.subr.bf16.mxu0 0
  %156 = vmatpush1.bf16.msra.mxu0 0
  %157 = vmatprep.subr.bf16.mxu0 0
  %158 = vmatpush1.bf16.msra.mxu0 0
  %159 = vmatprep.subr.bf16.mxu0 0
  %160 = vmatpush1.bf16.msra.mxu0 0
  %161 = vmatprep.subr.bf16.mxu0 0
  %162 = vmatpush1.bf16.msra.mxu0 0
  %163 = vmatprep.subr.bf16.mxu0 0
  %164 = vmatpush1.bf16.msra.mxu0 0
  %165 = vmatprep.subr.bf16.mxu0 0
  %166 = vmatpush1.bf16.msra.mxu0 0
  %167 = vmatprep.subr.bf16.mxu0 0
  %168 = vmatpush1.bf16.msra.mxu0 0
  %169 = vmatprep.subr.bf16.mxu0 0
  %170 = vmatpush1.bf16.msra.mxu0 0
  %171 = vmatprep.subr.bf16.mxu0 0
  %172 = vmatpush1.bf16.msra.mxu0 0
  %173 = vmatprep.subr.bf16.mxu0 0
  %174 = vmatpush1.bf16.msra.mxu0 0
  %175 = vmatprep.subr.bf16.mxu0 0
  %176 = vmatpush1.bf16.msra.mxu0 0
  %177 = vmatprep.subr.bf16.mxu0 0
  %178 = vmatpush1.bf16.msra.mxu0 0
  %179 = vmatprep.subr.bf16.mxu0 0
  %180 = vmatpush1.bf16.msra.mxu0 0
  %181 = vmatprep.subr.bf16.mxu0 0
  %182 = vmatpush1.bf16.msra.mxu0 0
  %183 = vmatprep.mubr.bf16.mxu0 0
  %184 = vmatmul.mubr.bf16.gmra.mrb[0].mxu0 %v149
  %v185 = vpop.f32.mrb[0].mxu0
  %v186 = vadd.f32 0.0, %v185
  %v187 = vpop.f32.mrb[0].mxu0
  %v188 = vpop.f32.mrb[0].mxu0
  %v189 = vadd.f32 0.0, %v188
  %v190 = vpop.f32.mrb[0].mxu0
  %191 = vdwg.mxu0
  %v192 = vadd.f32 %v137, %v186
  %v193 = vadd.f32 %v138, %v189
  %194 = vst [vmem:[#allocation2] sm:$0xff] %v192
  %195 = vst [vmem:[#allocation2 + $0x8] sm:$0xff] %v193
  // Predicated region
  $region22: #{gnn_forward.4} parent=0 // pred_check
    %p196 = pneg %p18
  $region23: #{gnn_forward.4} parent=0 // pred_check_branch
    %198 = sbr.rel (%p196) target = $region25
  $region24: #{gnn_forward.4} parent=0 // pred_region
    %v199 = vld [vmem:[#allocation2] sm:$0xff]
    %v200 = vld [vmem:[#allocation2 + $0x8] sm:$0xff]
    %v201 = vld [vmem:[%s3] sm:$0x1]
    %v203 = vlaneseq
    %v204 = vshrl.u32 %v203, 7
    %v205 = vsub.s32 0, %v204
    %v206 = vrot.slane %v201, %v205
    %v208 = vadd.f32 %v199, %v206
    %v209 = vadd.f32 %v200, %v206
    %v210 = vmax.f32 %v208, 0.0
    %v211 = vmax.f32 %v209, 0.0
    %v212 = vpack.c.bf16 %v211, %v210
    %v214 = vunpack.c.l.b16 %v212
    %v215 = vunpack.c.h.b16 %v212
    %v216 = vpack.c.b16 %v214, %v214
    %v217 = vpack.c.b16 %v215, %v215
    %220 = vst [vmem:[%s4] sm:$0xf] %v216
    %221 = vst [vmem:[%s4 + $0x4] sm:$0xf] %v217
  $region25: #{gnn_forward.4} parent=0 // pred_fallthru
    _
  // Predicated region
  $region26: #{gnn_forward.4} parent=0 // pred_check
    _
  $region27: #{gnn_forward.4} parent=0 // pred_check_branch
    %223 = sbr.rel (0) target = $region29
  $region28: #{gnn_forward.4} parent=0 // pred_region
    _
  $region29: #{gnn_forward.4} parent=0 // pred_fallthru
    _
  // Predicated region
  $region30: #{gnn_forward.4} parent=0 // pred_check
    _
  $region31: #{gnn_forward.4} parent=0 // pred_check_branch
    %225 = sbr.rel (0) target = $region33
  $region32: #{gnn_forward.4} parent=0 // pred_region
    _
  $region33: #{gnn_forward.4} parent=0 // pred_fallthru
    _

// kernel: gnn_forward.3
$region0: #{gnn_forward.3}
  #allocation0 [shape = 'u32[]', space=smem, size = 0x4, offset = 0x4, fixed_abs, tag = 'smem constant byte address 0x4 - core index']
  #allocation1 [shape = 'u32[144,128]{1,0:T(1,128)}', space=vmem, size = 0x12000, scoped, tag = 'internal scratch']
  #allocation2 [shape = 'f32[16,128]{1,0:T(8,128)}', space=vmem, size = 0x2000, scoped, tag = 'scratch operand']
  %s0 = inlined_call_operand.vmem [shape: bf16[16,16], index: 0, kind: input, shape index: {}]
  %s1 = inlined_call_operand.vmem [shape: bf16[16,128], index: 1, kind: input, shape index: {}]
  %s2 = inlined_call_operand.vmem [shape: f32[1,128], index: 2, kind: input, shape index: {}]
  %s3 = inlined_call_operand.vmem [shape: bf16[16,128], index: 3, kind: output, shape index: {}]
  %s4 = sld [smem:[#allocation0]]
  $region30: #{gnn_forward.3} parent=0
    _
  %s6 = ssub.s32 1, %s4
  %s7 = scalar_select 0, %s6, %s4
  // Predicated region
  $region2: #{gnn_forward.3} parent=0 // pred_check
    _
  $region3: #{gnn_forward.3} parent=0 // pred_check_branch
    %9 = sbr.rel (0) target = $region5
  $region4: #{gnn_forward.3} parent=0 // pred_region
    _
  $region5: #{gnn_forward.3} parent=0 // pred_fallthru
    _
  // Predicated region
  $region6: #{gnn_forward.3} parent=0 // pred_check
    _
  $region7: #{gnn_forward.3} parent=0 // pred_check_branch
    %11 = sbr.rel (0) target = $region9
  $region8: #{gnn_forward.3} parent=0 // pred_region
    _
  $region9: #{gnn_forward.3} parent=0 // pred_fallthru
    _
  // Predicated region
  $region10: #{gnn_forward.3} parent=0 // pred_check
    _
  $region11: #{gnn_forward.3} parent=0 // pred_check_branch
    %13 = sbr.rel (0) target = $region13
  $region12: #{gnn_forward.3} parent=0 // pred_region
    _
  $region13: #{gnn_forward.3} parent=0 // pred_fallthru
    _
  %p15 = scmp.eq.s32.totalorder 0, 0
  // Predicated region
  $region14: #{gnn_forward.3} parent=0 // pred_check
    %p16 = pneg %p15
  $region15: #{gnn_forward.3} parent=0 // pred_check_branch
    %18 = sbr.rel (%p16) target = $region17
  $region16: #{gnn_forward.3} parent=0 // pred_region
    %19 = vst [vmem:[#allocation2] sm:$0xff] 0.0
    %20 = vst [vmem:[#allocation2 + $0x8] sm:$0xff] 0.0
  $region17: #{gnn_forward.3} parent=0 // pred_fallthru
    _
  %v21 = vld [vmem:[#allocation2] sm:$0xff]
  %v22 = vld [vmem:[#allocation2 + $0x8] sm:$0xff]
  %v23 = vld [vmem:[%s0] sm:$0xf]
  %v24 = vld [vmem:[%s0 + $0x4] sm:$0xf]
  %v25 = vld [vmem:[%s1] sm:$0xf]
  %v26 = vld [vmem:[%s1 + $0x4] sm:$0xf]
  %v29 = vunpack.c.l.b16 %v23
  %v30 = vunpack.c.l.b16 %v24
  %v31 = vpack.c.b16 %v30, %v29
  %v34 = vunpack.c.l.b16 %v25
  %v35 = vunpack.c.l.b16 %v26
  %v36 = vpack.c.b16 %v35, %v34
  %vm38 = vcmask 130048
  %v40 = vsel %vm38, %v31, 0
  %42 = vmatprep.subr.bf16.mxu0 0
  %43 = vmatpush1.bf16.msra.mxu0 %v36
  %44 = vmatprep.subr.bf16.mxu0 0
  %45 = vmatpush1.bf16.msra.mxu0 0
  %46 = vmatprep.subr.bf16.mxu0 0
  %47 = vmatpush1.bf16.msra.mxu0 0
  %48 = vmatprep.subr.bf16.mxu0 0
  %49 = vmatpush1.bf16.msra.mxu0 0
  %50 = vmatprep.subr.bf16.mxu0 0
  %51 = vmatpush1.bf16.msra.mxu0 0
  %52 = vmatprep.subr.bf16.mxu0 0
  %53 = vmatpush1.bf16.msra.mxu0 0
  %54 = vmatprep.subr.bf16.mxu0 0
  %55 = vmatpush1.bf16.msra.mxu0 0
  %56 = vmatprep.subr.bf16.mxu0 0
  %57 = vmatpush1.bf16.msra.mxu0 0
  %58 = vmatprep.subr.bf16.mxu0 0
  %59 = vmatpush1.bf16.msra.mxu0 0
  %60 = vmatprep.subr.bf16.mxu0 0
  %61 = vmatpush1.bf16.msra.mxu0 0
  %62 = vmatprep.subr.bf16.mxu0 0
  %63 = vmatpush1.bf16.msra.mxu0 0
  %64 = vmatprep.subr.bf16.mxu0 0
  %65 = vmatpush1.bf16.msra.mxu0 0
  %66 = vmatprep.subr.bf16.mxu0 0
  %67 = vmatpush1.bf16.msra.mxu0 0
  %68 = vmatprep.subr.bf16.mxu0 0
  %69 = vmatpush1.bf16.msra.mxu0 0
  %70 = vmatprep.subr.bf16.mxu0 0
  %71 = vmatpush1.bf16.msra.mxu0 0
  %72 = vmatprep.subr.bf16.mxu0 0
  %73 = vmatpush1.bf16.msra.mxu0 0
  %74 = vmatprep.mubr.bf16.mxu0 0
  %75 = vmatmul.mubr.bf16.gmra.mrb[0].mxu0 %v40
  %v76 = vpop.f32.mrb[0].mxu0
  %v77 = vadd.f32 0.0, %v76
  %v78 = vpop.f32.mrb[0].mxu0
  %v79 = vpop.f32.mrb[0].mxu0
  %v80 = vadd.f32 0.0, %v79
  %v81 = vpop.f32.mrb[0].mxu0
  %82 = vdwg.mxu0
  %v83 = vadd.f32 %v21, %v77
  %v84 = vadd.f32 %v22, %v80
  %85 = vst [vmem:[#allocation2] sm:$0xff] %v83
  %86 = vst [vmem:[#allocation2 + $0x8] sm:$0xff] %v84
  // Predicated region
  $region18: #{gnn_forward.3} parent=0 // pred_check
    %p87 = pneg %p15
  $region19: #{gnn_forward.3} parent=0 // pred_check_branch
    %89 = sbr.rel (%p87) target = $region21
  $region20: #{gnn_forward.3} parent=0 // pred_region
    %v90 = vld [vmem:[#allocation2] sm:$0xff]
    %v91 = vld [vmem:[#allocation2 + $0x8] sm:$0xff]
    %v92 = vld [vmem:[%s2] sm:$0x1]
    %v94 = vlaneseq
    %v95 = vshrl.u32 %v94, 7
    %v96 = vsub.s32 0, %v95
    %v97 = vrot.slane %v92, %v96
    %v99 = vadd.f32 %v90, %v97
    %v100 = vadd.f32 %v91, %v97
    %v101 = vmax.f32 %v99, 0.0
    %v102 = vmax.f32 %v100, 0.0
    %v103 = vpack.c.bf16 %v102, %v101
    %v105 = vunpack.c.l.b16 %v103
    %v106 = vunpack.c.h.b16 %v103
    %v107 = vpack.c.b16 %v105, %v105
    %v108 = vpack.c.b16 %v106, %v106
    %111 = vst [vmem:[%s3] sm:$0xf] %v107
    %112 = vst [vmem:[%s3 + $0x4] sm:$0xf] %v108
  $region21: #{gnn_forward.3} parent=0 // pred_fallthru
    _
  // Predicated region
  $region22: #{gnn_forward.3} parent=0 // pred_check
    _
  $region23: #{gnn_forward.3} parent=0 // pred_check_branch
    %114 = sbr.rel (0) target = $region25
  $region24: #{gnn_forward.3} parent=0 // pred_region
    _
  $region25: #{gnn_forward.3} parent=0 // pred_fallthru
    _
  // Predicated region
  $region26: #{gnn_forward.3} parent=0 // pred_check
    _
  $region27: #{gnn_forward.3} parent=0 // pred_check_branch
    %116 = sbr.rel (0) target = $region29
  $region28: #{gnn_forward.3} parent=0 // pred_region
    _
  $region29: #{gnn_forward.3} parent=0 // pred_fallthru
    _

</llo_original>
